<compile_context>
chip_gen: v7x
topology: tpu7x:2x2x1
jax: 0.10.0
libtpu: 0.0.40
codegen_flags: <defaults>
</compile_context>

<pallas_src>
import functools

import jax
import jax.numpy as jnp
from jax.experimental import pallas as pl
from jax.experimental.pallas import tpu as pltpu

LANE = 128
SUBLANE = 8


def _round_up(n, m):
    return (n + m - 1) // m * m


def _ac_fused_kernel(x_ref, w1_ref, b1_ref, w2_ref, b2_ref, o_ref):
    """out = relu(x @ W1_cat + b1_cat) @ W2_cat + b2_cat (single lane-dense slab)."""
    w1 = w1_ref[...]
    w2 = w2_ref[...]
    x = x_ref[...]
    # MXU matmuls accumulate in f32; elementwise math stays in f32.
    h = jnp.dot(x.astype(w1.dtype), w1, preferred_element_type=jnp.float32)
    h = jnp.maximum(h + b1_ref[...].astype(jnp.float32), 0.0)
    o = jnp.dot(h.astype(w2.dtype), w2, preferred_element_type=jnp.float32)
    o = o + b2_ref[...].astype(jnp.float32)
    o_ref[...] = o.astype(o_ref.dtype)


def prepare_fused_params(params, dtype=jnp.float32):
    """Build the fused (concatenated / block-diagonal, lane-padded) weights.

    Call once per parameter update, outside the per-step forward.
    Set dtype=jnp.bfloat16 to feed the MXU bf16 operands (v6e/v7x).
    """
    a_w1, a_b1 = params["a_w1"], params["a_b1"]
    c_w1, c_b1 = params["c_w1"], params["c_b1"]
    a_w2, a_b2 = params["a_w2"], params["a_b2"]
    c_w2, c_b2 = params["c_w2"], params["c_b2"]

    h_a, n_a = a_w2.shape
    h_c, n_c = c_w2.shape
    hidden_cat = h_a + h_c
    out_pad = _round_up(n_a + n_c, LANE)  # lane-dense output width (128)

    w1 = jnp.concatenate([a_w1, c_w1], axis=1).astype(dtype)          # (S, 2H)
    b1 = jnp.concatenate([a_b1, c_b1], axis=1).astype(jnp.float32)    # (1, 2H)

    w2 = jnp.zeros((hidden_cat, out_pad), dtype)                      # block-diag
    w2 = w2.at[:h_a, :n_a].set(a_w2.astype(dtype))
    w2 = w2.at[h_a:, n_a:n_a + n_c].set(c_w2.astype(dtype))

    b2 = jnp.zeros((1, out_pad), jnp.float32)
    b2 = b2.at[:, :n_a].set(a_b2.astype(jnp.float32))
    b2 = b2.at[:, n_a:n_a + n_c].set(c_b2.astype(jnp.float32))

    fused = {"w1": w1, "b1": b1, "w2": w2, "b2": b2}
    meta = {"n_actor": int(n_a), "n_critic": int(n_c)}
    return fused, meta


@functools.partial(jax.jit, static_argnames=("n_actor", "n_critic", "block_b"))
def ac_agent_forward(state, fused, *, n_actor, n_critic, block_b=256):
    """Equivalent of ACAgent.forward: returns (actor_logits, critic_value)."""
    B, S = state.shape
    out_pad = fused["w2"].shape[1]

    # Pad batch to a sublane multiple and pick a batch tile (multiple of 8).
    blk = _round_up(min(block_b, _round_up(B, SUBLANE)), SUBLANE)
    B_pad = _round_up(B, blk)
    if B_pad != B:
        state = jnp.pad(state, ((0, B_pad - B), (0, 0)))

    out = pl.pallas_call(
        _ac_fused_kernel,
        out_shape=jax.ShapeDtypeStruct((B_pad, out_pad), jnp.float32),
        grid=(B_pad // blk,),
        in_specs=[
            pl.BlockSpec((blk, S), lambda i: (i, 0)),                 # x: tiled over batch
            pl.BlockSpec(fused["w1"].shape, lambda i: (0, 0)),        # weights resident
            pl.BlockSpec(fused["b1"].shape, lambda i: (0, 0)),
            pl.BlockSpec(fused["w2"].shape, lambda i: (0, 0)),
            pl.BlockSpec(fused["b2"].shape, lambda i: (0, 0)),
        ],
        out_specs=pl.BlockSpec((blk, out_pad), lambda i: (i, 0)),     # lane-dense (…,128)
        compiler_params=pltpu.CompilerParams(
            dimension_semantics=("parallel",),                        # v7x: shard batch grid
        ),
    )(state, fused["w1"], fused["b1"], fused["w2"], fused["b2"])

    actor = out[:B, :n_actor]
    critic = out[:B, n_actor:n_actor + n_critic]
    return actor, critic


def xavier_uniform(key, fan_in, fan_out, dtype=jnp.float32):
    """Deterministic xavier_uniform init (matches 'xavier_u' in the module)."""
    limit = jnp.sqrt(6.0 / (fan_in + fan_out))
    return jax.random.uniform(key, (fan_in, fan_out), dtype, -limit, limit)


def _reference_forward(state, p):
    h = jnp.maximum(state @ p["a_w1"] + p["a_b1"], 0.0)
    actor = h @ p["a_w2"] + p["a_b2"]
    h = jnp.maximum(state @ p["c_w1"] + p["c_b1"], 0.0)
    critic = h @ p["c_w2"] + p["c_b2"]
    return actor, critic


if __name__ == "__main__":
    # Small synthetic shapes consistent with the module:
    #   action_size: 13 * 4 = 52 (full_deck=True); one hidden layer of 32.
    batch = 2
    state_size = 64  # TODO(synk): HeartsStateParser.state_len is game-specific; 64 is a synthetic stand-in.
    hidden = 32
    action_size = 13 * 4

    key = jax.random.PRNGKey(0)
    ks = jax.random.split(key, 8)

    params = {
        "a_w1": xavier_uniform(ks[0], state_size, hidden),
        "a_b1": jnp.zeros((1, hidden), jnp.float32),
        "a_w2": xavier_uniform(ks[1], hidden, action_size),
        "a_b2": jnp.zeros((1, action_size), jnp.float32),
        "c_w1": xavier_uniform(ks[2], state_size, hidden),
        "c_b1": jnp.zeros((1, hidden), jnp.float32),
        "c_w2": xavier_uniform(ks[3], hidden, 1),
        "c_b2": jnp.zeros((1, 1), jnp.float32),
    }
    state = jax.random.normal(ks[4], (batch, state_size), jnp.float32)

    # Fused weights are built once (not per forward call).
    fused, meta = prepare_fused_params(params, dtype=jnp.float32)

    actor_logits, critic_value = ac_agent_forward(
        state, fused, n_actor=meta["n_actor"], n_critic=meta["n_critic"])
    jax.block_until_ready((actor_logits, critic_value))

    # sanity check vs. plain-JAX reference
    ref_actor, ref_critic = _reference_forward(state, params)
    assert actor_logits.shape == (batch, action_size)
    assert critic_value.shape == (batch, 1)
    assert jnp.allclose(actor_logits, ref_actor, atol=1e-5, rtol=1e-5)
    assert jnp.allclose(critic_value, ref_critic, atol=1e-5, rtol=1e-5)

    print("KERNEL_OK")
</pallas_src>

<mosaic_0001>
module attributes {stable_mosaic.version = 11 : i64} {
  func.func @_ac_fused_kernel(%arg0: i32, %arg1: memref<8x64xf32, #tpu.memory_space<vmem>>, %arg2: memref<64x64xf32, #tpu.memory_space<vmem>>, %arg3: memref<1x64xf32, #tpu.memory_space<vmem>>, %arg4: memref<64x128xf32, #tpu.memory_space<vmem>>, %arg5: memref<1x128xf32, #tpu.memory_space<vmem>>, %arg6: memref<8x128xf32, #tpu.memory_space<vmem>>) attributes {dimension_semantics = [#tpu.dimension_semantics<parallel>], iteration_bounds = array<i64: 1>, scalar_prefetch = 0 : i64, scratch_operands = 0 : i64, tpu.core_type = #tpu.core_type<tc>, window_params = [{transform_indices = @transform_0, window_bounds = array<i64: 8, 64>}, {pipeline_mode = #tpu.pipeline_mode<synchronous>, transform_indices = @transform_1, window_bounds = array<i64: 64, 64>}, {pipeline_mode = #tpu.pipeline_mode<synchronous>, transform_indices = @transform_2, window_bounds = array<i64: 1, 64>}, {pipeline_mode = #tpu.pipeline_mode<synchronous>, transform_indices = @transform_3, window_bounds = array<i64: 64, 128>}, {pipeline_mode = #tpu.pipeline_mode<synchronous>, transform_indices = @transform_4, window_bounds = array<i64: 1, 128>}, {transform_indices = @transform_5, window_bounds = array<i64: 8, 128>}]} {
    %c0 = arith.constant 0 : index
    %c0_0 = arith.constant 0 : index
    %0 = vector.load %arg2[%c0, %c0_0] : memref<64x64xf32, #tpu.memory_space<vmem>>, vector<64x64xf32>
    %c0_1 = arith.constant 0 : index
    %c0_2 = arith.constant 0 : index
    %1 = vector.load %arg4[%c0_1, %c0_2] : memref<64x128xf32, #tpu.memory_space<vmem>>, vector<64x128xf32>
    %c0_3 = arith.constant 0 : index
    %c0_4 = arith.constant 0 : index
    %2 = vector.load %arg1[%c0_3, %c0_4] : memref<8x64xf32, #tpu.memory_space<vmem>>, vector<8x64xf32>
    %cst = arith.constant dense<0.000000e+00> : vector<8x64xf32>
    %3 = tpu.matmul %2, %0, %cst {dimension_numbers = #tpu.dot_dimension_numbers<[1], [0], [0], [1], [0, 0, 1, 1], [], []>} : vector<8x64xf32>, vector<64x64xf32>, vector<8x64xf32> -> vector<8x64xf32>
    %c0_5 = arith.constant 0 : index
    %c0_6 = arith.constant 0 : index
    %4 = vector.load %arg3[%c0_5, %c0_6] : memref<1x64xf32, #tpu.memory_space<vmem>>, vector<1x64xf32>
    %5 = vector.broadcast %4 : vector<1x64xf32> to vector<8x64xf32>
    %6 = arith.addf %3, %5 : vector<8x64xf32>
    %cst_7 = arith.constant 0.000000e+00 : f32
    %7 = vector.broadcast %cst_7 : f32 to vector<8x64xf32>
    %8 = arith.maximumf %6, %7 : vector<8x64xf32>
    %cst_8 = arith.constant dense<0.000000e+00> : vector<8x128xf32>
    %9 = tpu.matmul %8, %1, %cst_8 {dimension_numbers = #tpu.dot_dimension_numbers<[1], [0], [0], [1], [0, 0, 1, 1], [], []>} : vector<8x64xf32>, vector<64x128xf32>, vector<8x128xf32> -> vector<8x128xf32>
    %c0_9 = arith.constant 0 : index
    %c0_10 = arith.constant 0 : index
    %10 = vector.load %arg5[%c0_9, %c0_10] : memref<1x128xf32, #tpu.memory_space<vmem>>, vector<1x128xf32>
    %11 = vector.broadcast %10 : vector<1x128xf32> to vector<8x128xf32>
    %12 = arith.addf %9, %11 : vector<8x128xf32>
    %c0_11 = arith.constant 0 : index
    %c0_12 = arith.constant 0 : index
    %13 = vector.load %arg6[%c0_11, %c0_12] : memref<8x128xf32, #tpu.memory_space<vmem>>, vector<8x128xf32>
    tpu.vector_store %arg6[%c0_11, %c0_12], %12 {strides = array<i32>} : memref<8x128xf32, #tpu.memory_space<vmem>>, vector<8x128xf32>,
    return
  }
  func.func @transform_0(%arg0: i32) -> (i32, i32) {
    %c0_i32 = arith.constant 0 : i32
    %c0_i32_0 = arith.constant 0 : i32
    return %arg0, %c0_i32 : i32, i32
  }
  func.func @transform_1(%arg0: i32) -> (i32, i32) {
    %c0_i32 = arith.constant 0 : i32
    %c0_i32_0 = arith.constant 0 : i32
    %c0_i32_1 = arith.constant 0 : i32
    return %c0_i32, %c0_i32_0 : i32, i32
  }
  func.func @transform_2(%arg0: i32) -> (i32, i32) {
    %c0_i32 = arith.constant 0 : i32
    %c0_i32_0 = arith.constant 0 : i32
    %c0_i32_1 = arith.constant 0 : i32
    return %c0_i32, %c0_i32_0 : i32, i32
  }
  func.func @transform_3(%arg0: i32) -> (i32, i32) {
    %c0_i32 = arith.constant 0 : i32
    %c0_i32_0 = arith.constant 0 : i32
    %c0_i32_1 = arith.constant 0 : i32
    return %c0_i32, %c0_i32_0 : i32, i32
  }
  func.func @transform_4(%arg0: i32) -> (i32, i32) {
    %c0_i32 = arith.constant 0 : i32
    %c0_i32_0 = arith.constant 0 : i32
    %c0_i32_1 = arith.constant 0 : i32
    return %c0_i32, %c0_i32_0 : i32, i32
  }
  func.func @transform_5(%arg0: i32) -> (i32, i32) {
    %c0_i32 = arith.constant 0 : i32
    %c0_i32_0 = arith.constant 0 : i32
    return %arg0, %c0_i32 : i32, i32
  }
}

</mosaic_0001>

<llo_original>
// kernel: ac_agent_forward.1
$region0: #{ac_agent_forward.1}
  #allocation0 [shape = 'u32[]', space=smem, size = 0x4, offset = 0x4, fixed_abs, tag = 'smem constant byte address 0x4 - core index']
  #allocation1 [shape = 'u32[144,128]{1,0:T(1,128)}', space=vmem, size = 0x12000, scoped, tag = 'internal scratch']
  %s0 = inlined_call_operand.vmem [shape: f32[8,64], index: 0, kind: input, shape index: {}]
  %s1 = inlined_call_operand.hbm [shape: f32[64,64], index: 1, kind: input, shape index: {}]
  %s2 = inlined_call_operand.vmem [shape: f32[1,64], index: 2, kind: input, shape index: {}]
  %s3 = inlined_call_operand.hbm [shape: f32[64,128], index: 3, kind: input, shape index: {}]
  %s4 = inlined_call_operand.vmem [shape: f32[1,128], index: 4, kind: input, shape index: {}]
  %s5 = inlined_call_operand.vmem [shape: f32[8,128], index: 5, kind: output, shape index: {}]
  %s6 = sld [smem:[#allocation0]]
  $region38: #{ac_agent_forward.1} parent=0
    _
  %s8 = ssub.s32 1, %s6
  %s9 = scalar_select 0, %s8, %s6
  $region1: #{ac_agent_forward.1} parent=0
    #allocation2 [shape = 'u8[32768]{0}', space=vmem, size = 0x8000, scoped, tag = 'input window, operand 1, single buffered']
    #allocation3 [shape = 's32[1]{0}', space=sflag, size = 0x4, scoped, tag = 'scoped memory for ac_agent_forward.1']
    #allocation4 [shape = 'u8[32768]{0}', space=vmem, size = 0x8000, scoped, tag = 'input window, operand 3, single buffered']
    #allocation5 [shape = 's32[1]{0}', space=sflag, size = 0x4, scoped, tag = 'scoped memory for ac_agent_forward.1']
    %10 = vsyncpa [#allocation3], 0
    %11 = vsyncpa [#allocation5], 0
    // Predicated region
    $region2: #{ac_agent_forward.1} parent=1 // pred_check
      _
    $region3: #{ac_agent_forward.1} parent=1 // pred_check_branch
      %13 = sbr.rel (0) target = $region5
    $region4: #{ac_agent_forward.1} parent=1 // pred_region
      _
    $region5: #{ac_agent_forward.1} parent=1 // pred_fallthru
      _
    // Predicated region
    $region6: #{ac_agent_forward.1} parent=1 // pred_check
      _
    $region7: #{ac_agent_forward.1} parent=1 // pred_check_branch
      %15 = sbr.rel (0) target = $region9
    $region8: #{ac_agent_forward.1} parent=1 // pred_region
      %s17 = ssub.s32 1024, 1024
      %18 = vsyncadd [#allocation3], %s17
      %s19 = sshll.u32 [#allocation2], 4
      %s20 = int_to_ptr.vmem [resolvable:$true] %s19
      %25 = dma.hbm_to_vmem [thread:$0]  %s1, 1024, %s20, [#allocation3], 128, 128, 8
    $region9: #{ac_agent_forward.1} parent=1 // pred_fallthru
      _
    // Predicated region
    $region10: #{ac_agent_forward.1} parent=1 // pred_check
      _
    $region11: #{ac_agent_forward.1} parent=1 // pred_check_branch
      %27 = sbr.rel (0) target = $region13
    $region12: #{ac_agent_forward.1} parent=1 // pred_region
      _
    $region13: #{ac_agent_forward.1} parent=1 // pred_fallthru
      _
    // Predicated region
    $region14: #{ac_agent_forward.1} parent=1 // pred_check
      _
    $region15: #{ac_agent_forward.1} parent=1 // pred_check_branch
      %29 = sbr.rel (0) target = $region17
    $region16: #{ac_agent_forward.1} parent=1 // pred_region
      %s31 = ssub.s32 1024, 1024
      %32 = vsyncadd [#allocation5], %s31
      %s33 = sshll.u32 [#allocation4], 4
      %s34 = int_to_ptr.vmem [resolvable:$true] %s33
      %39 = dma.hbm_to_vmem [thread:$0]  %s3, 1024, %s34, [#allocation5], 128, 128, 8
    $region17: #{ac_agent_forward.1} parent=1 // pred_fallthru
      _
    // Predicated region
    $region18: #{ac_agent_forward.1} parent=1 // pred_check
      _
    $region19: #{ac_agent_forward.1} parent=1 // pred_check_branch
      %41 = sbr.rel (0) target = $region21
    $region20: #{ac_agent_forward.1} parent=1 // pred_region
      _
    $region21: #{ac_agent_forward.1} parent=1 // pred_fallthru
      _
    // Predicated region
    $region22: #{ac_agent_forward.1} parent=1 // pred_check
      _
    $region23: #{ac_agent_forward.1} parent=1 // pred_check_branch
      %43 = sbr.rel (0) target = $region25
    $region24: #{ac_agent_forward.1} parent=1 // pred_region
      %44 = dma.done [#allocation3], 1024
    $region25: #{ac_agent_forward.1} parent=1 // pred_fallthru
      _
    // Predicated region
    $region26: #{ac_agent_forward.1} parent=1 // pred_check
      _
    $region27: #{ac_agent_forward.1} parent=1 // pred_check_branch
      %46 = sbr.rel (0) target = $region29
    $region28: #{ac_agent_forward.1} parent=1 // pred_region
      %47 = dma.done [#allocation5], 1024
    $region29: #{ac_agent_forward.1} parent=1 // pred_fallthru
      _
    %v48 = vld [vmem:[#allocation2] sm:$0xff]
    %v49 = vld [vmem:[#allocation2 + $0x8] sm:$0xff]
    %v50 = vld [vmem:[#allocation2 + $0x10] sm:$0xff]
    %v51 = vld [vmem:[#allocation2 + $0x18] sm:$0xff]
    %v52 = vld [vmem:[#allocation2 + $0x20] sm:$0xff]
    %v53 = vld [vmem:[#allocation2 + $0x28] sm:$0xff]
    %v54 = vld [vmem:[#allocation2 + $0x30] sm:$0xff]
    %v55 = vld [vmem:[#allocation2 + $0x38] sm:$0xff]
    %v56 = vld [vmem:[#allocation4] sm:$0xff]
    %v57 = vld [vmem:[#allocation4 + $0x8] sm:$0xff]
    %v58 = vld [vmem:[#allocation4 + $0x10] sm:$0xff]
    %v59 = vld [vmem:[#allocation4 + $0x18] sm:$0xff]
    %v60 = vld [vmem:[#allocation4 + $0x20] sm:$0xff]
    %v61 = vld [vmem:[#allocation4 + $0x28] sm:$0xff]
    %v62 = vld [vmem:[#allocation4 + $0x30] sm:$0xff]
    %v63 = vld [vmem:[#allocation4 + $0x38] sm:$0xff]
    %v64 = vld [vmem:[%s0] sm:$0xff]
    %v65 = vld [vmem:[%s2] sm:$0x1]
    %v67 = vlaneseq
    %v68 = vshrl.u32 %v67, 7
    %v69 = vsub.s32 0, %v68
    %v70 = vrot.slane %v65, %v69
    %vm72 = vcmask 523264
    %v74 = vsel %vm72, %v64, 0
    %76 = vmatprep.subr.mxu0 0.0
    %77 = vmatpush1.msra.mxu0 %v48
    %78 = vmatprep.subr.mxu0 0.0
    %79 = vmatpush1.msra.mxu0 %v49
    %80 = vmatprep.subr.mxu0 0.0
    %81 = vmatpush1.msra.mxu0 %v50
    %82 = vmatprep.subr.mxu0 0.0
    %83 = vmatpush1.msra.mxu0 %v51
    %84 = vmatprep.subr.mxu0 0.0
    %85 = vmatpush1.msra.mxu0 %v52
    %86 = vmatprep.subr.mxu0 0.0
    %87 = vmatpush1.msra.mxu0 %v53
    %88 = vmatprep.subr.mxu0 0.0
    %89 = vmatpush1.msra.mxu0 %v54
    %90 = vmatprep.subr.mxu0 0.0
    %91 = vmatpush1.msra.mxu0 %v55
    %92 = vmatprep.subr.mxu0 0.0
    %93 = vmatpush1.msra.mxu0 0.0
    %94 = vmatprep.subr.mxu0 0.0
    %95 = vmatpush1.msra.mxu0 0.0
    %96 = vmatprep.subr.mxu0 0.0
    %97 = vmatpush1.msra.mxu0 0.0
    %98 = vmatprep.subr.mxu0 0.0
    %99 = vmatpush1.msra.mxu0 0.0
    %100 = vmatprep.subr.mxu0 0.0
    %101 = vmatpush1.msra.mxu0 0.0
    %102 = vmatprep.subr.mxu0 0.0
    %103 = vmatpush1.msra.mxu0 0.0
    %104 = vmatprep.subr.mxu0 0.0
    %105 = vmatpush1.msra.mxu0 0.0
    %106 = vmatprep.subr.mxu0 0.0
    %107 = vmatpush1.msra.mxu0 0.0
    %108 = vmatprep.subr.mxu0 0.0
    %109 = vmatpush1.msra.mxu0 0.0
    %110 = vmatprep.subr.mxu0 0.0
    %111 = vmatpush1.msra.mxu0 0.0
    %112 = vmatprep.subr.mxu0 0.0
    %113 = vmatpush1.msra.mxu0 0.0
    %114 = vmatprep.subr.mxu0 0.0
    %115 = vmatpush1.msra.mxu0 0.0
    %116 = vmatprep.subr.mxu0 0.0
    %117 = vmatpush1.msra.mxu0 0.0
    %118 = vmatprep.subr.mxu0 0.0
    %119 = vmatpush1.msra.mxu0 0.0
    %120 = vmatprep.subr.mxu0 0.0
    %121 = vmatpush1.msra.mxu0 0.0
    %122 = vmatprep.subr.mxu0 0.0
    %123 = vmatpush1.msra.mxu0 0.0
    %124 = vmatprep.subr.mxu0 0.0
    %125 = vmatpush1.msra.mxu0 0.0
    %126 = vmatprep.subr.mxu0 0.0
    %127 = vmatpush1.msra.mxu0 0.0
    %128 = vmatprep.subr.mxu0 0.0
    %129 = vmatpush1.msra.mxu0 0.0
    %130 = vmatprep.subr.mxu0 0.0
    %131 = vmatpush1.msra.mxu0 0.0
    %132 = vmatprep.subr.mxu0 0.0
    %133 = vmatpush1.msra.mxu0 0.0
    %134 = vmatprep.subr.mxu0 0.0
    %135 = vmatpush1.msra.mxu0 0.0
    %136 = vmatprep.subr.mxu0 0.0
    %137 = vmatpush1.msra.mxu0 0.0
    %138 = vmatprep.subr.mxu0 0.0
    %139 = vmatpush1.msra.mxu0 0.0
    %140 = vmatprep.mubr.f32.mxu0 0.0
    %141 = vmatmul.mubr.f32.gmra.mrb[0].mxu0 %v74
    %v142 = vpop.f32.mrb[0].mxu0
    %v143 = vadd.f32 %v70, %v142
    %v144 = vpop.f32.mrb[0].mxu0
    %145 = vdwg.mxu0
    %v146 = vmax.f32 %v143, 0.0
    %v147 = vld [vmem:[%s4] sm:$0x1]
    %v149 = vlaneseq
    %v150 = vshrl.u32 %v149, 7
    %v151 = vsub.s32 0, %v150
    %v152 = vrot.slane %v147, %v151
    %v155 = vsel %vm72, %v146, 0
    %157 = vmatprep.subr.mxu0 0.0
    %158 = vmatpush1.msra.mxu0 %v56
    %159 = vmatprep.subr.mxu0 0.0
    %160 = vmatpush1.msra.mxu0 %v57
    %161 = vmatprep.subr.mxu0 0.0
    %162 = vmatpush1.msra.mxu0 %v58
    %163 = vmatprep.subr.mxu0 0.0
    %164 = vmatpush1.msra.mxu0 %v59
    %165 = vmatprep.subr.mxu0 0.0
    %166 = vmatpush1.msra.mxu0 %v60
    %167 = vmatprep.subr.mxu0 0.0
    %168 = vmatpush1.msra.mxu0 %v61
    %169 = vmatprep.subr.mxu0 0.0
    %170 = vmatpush1.msra.mxu0 %v62
    %171 = vmatprep.subr.mxu0 0.0
    %172 = vmatpush1.msra.mxu0 %v63
    %173 = vmatprep.subr.mxu0 0.0
    %174 = vmatpush1.msra.mxu0 0.0
    %175 = vmatprep.subr.mxu0 0.0
    %176 = vmatpush1.msra.mxu0 0.0
    %177 = vmatprep.subr.mxu0 0.0
    %178 = vmatpush1.msra.mxu0 0.0
    %179 = vmatprep.subr.mxu0 0.0
    %180 = vmatpush1.msra.mxu0 0.0
    %181 = vmatprep.subr.mxu0 0.0
    %182 = vmatpush1.msra.mxu0 0.0
    %183 = vmatprep.subr.mxu0 0.0
    %184 = vmatpush1.msra.mxu0 0.0
    %185 = vmatprep.subr.mxu0 0.0
    %186 = vmatpush1.msra.mxu0 0.0
    %187 = vmatprep.subr.mxu0 0.0
    %188 = vmatpush1.msra.mxu0 0.0
    %189 = vmatprep.subr.mxu0 0.0
    %190 = vmatpush1.msra.mxu0 0.0
    %191 = vmatprep.subr.mxu0 0.0
    %192 = vmatpush1.msra.mxu0 0.0
    %193 = vmatprep.subr.mxu0 0.0
    %194 = vmatpush1.msra.mxu0 0.0
    %195 = vmatprep.subr.mxu0 0.0
    %196 = vmatpush1.msra.mxu0 0.0
    %197 = vmatprep.subr.mxu0 0.0
    %198 = vmatpush1.msra.mxu0 0.0
    %199 = vmatprep.subr.mxu0 0.0
    %200 = vmatpush1.msra.mxu0 0.0
    %201 = vmatprep.subr.mxu0 0.0
    %202 = vmatpush1.msra.mxu0 0.0
    %203 = vmatprep.subr.mxu0 0.0
    %204 = vmatpush1.msra.mxu0 0.0
    %205 = vmatprep.subr.mxu0 0.0
    %206 = vmatpush1.msra.mxu0 0.0
    %207 = vmatprep.subr.mxu0 0.0
    %208 = vmatpush1.msra.mxu0 0.0
    %209 = vmatprep.subr.mxu0 0.0
    %210 = vmatpush1.msra.mxu0 0.0
    %211 = vmatprep.subr.mxu0 0.0
    %212 = vmatpush1.msra.mxu0 0.0
    %213 = vmatprep.subr.mxu0 0.0
    %214 = vmatpush1.msra.mxu0 0.0
    %215 = vmatprep.subr.mxu0 0.0
    %216 = vmatpush1.msra.mxu0 0.0
    %217 = vmatprep.subr.mxu0 0.0
    %218 = vmatpush1.msra.mxu0 0.0
    %219 = vmatprep.subr.mxu0 0.0
    %220 = vmatpush1.msra.mxu0 0.0
    %221 = vmatprep.mubr.f32.mxu0 0.0
    %222 = vmatmul.mubr.f32.gmra.mrb[0].mxu0 %v155
    %v223 = vpop.f32.mrb[0].mxu0
    %v224 = vadd.f32 %v152, %v223
    %v225 = vpop.f32.mrb[0].mxu0
    %226 = vdwg.mxu0
    %227 = vst [vmem:[%s5] sm:$0xff] %v224
    // Predicated region
    $region30: #{ac_agent_forward.1} parent=1 // pred_check
      _
    $region31: #{ac_agent_forward.1} parent=1 // pred_check_branch
      %229 = sbr.rel (0) target = $region33
    $region32: #{ac_agent_forward.1} parent=1 // pred_region
      _
    $region33: #{ac_agent_forward.1} parent=1 // pred_fallthru
      _
    // Predicated region
    $region34: #{ac_agent_forward.1} parent=1 // pred_check
      _
    $region35: #{ac_agent_forward.1} parent=1 // pred_check_branch
      %231 = sbr.rel (0) target = $region37
    $region36: #{ac_agent_forward.1} parent=1 // pred_region
      _
    $region37: #{ac_agent_forward.1} parent=1 // pred_fallthru
      _
    %232 = vsyncpa [#allocation3], 1
    %233 = vsyncpa [#allocation5], 1

</llo_original>
